<compile_context>
chip_gen: v6e
topology: v6e:2x2x1
jax: 0.10.0
libtpu: 0.0.40
codegen_flags: <defaults>
</compile_context>

<pallas_src>
import jax
import jax.numpy as jnp
from jax.experimental import pallas as pl
from jax.experimental.pallas import tpu as pltpu


# ----------------------------- Pallas kernel --------------------------------
def _mlp_head_kernel(x_ref, s_ref, w6_ref, b6_ref, w7_ref, b7_ref, o_ref, acc_ref):
    # x_ref:   [TM, TK] bf16  pooled ROI feature block, flattened NCHW (k = c*R*R + h*R + w)
    # s_ref:   [1,  TK] f32   per-support channel scale block (support picked by the grid)
    # w6_ref:  [TK, H]  bf16  fc6 weight block (transposed)
    # b6_ref:  [1,  H]  f32
    # w7_ref:  [H,  H]  bf16  fc7 weight (transposed, grid-invariant)
    # b7_ref:  [1,  H]  f32
    # o_ref:   [TM, H]  f32   output rows for (support b, proposal m-tile)
    # acc_ref: [TM, H]  f32   fc6 accumulator, persists across the k axis
    k = pl.program_id(2)

    @pl.when(k == 0)
    def _():
        acc_ref[...] = jnp.zeros_like(acc_ref)

    # Scale multiply in f32 on the VPU, cast to bf16 as the block is produced
    # (single bf16 tile in flight), f32 accumulation on the MXU.
    xs = (x_ref[...].astype(jnp.float32) * s_ref[...]).astype(jnp.bfloat16)
    acc_ref[...] += jnp.dot(xs, w6_ref[...], preferred_element_type=jnp.float32)

    @pl.when(k == pl.num_programs(2) - 1)
    def _():
        h = jnp.maximum(acc_ref[...] + b6_ref[...], 0.0)                 # fc6 bias + ReLU
        o = jnp.dot(h.astype(jnp.bfloat16), w7_ref[...],
                    preferred_element_type=jnp.float32) + b7_ref[...]    # fc7
        o_ref[...] = jnp.maximum(o, 0.0).astype(o_ref.dtype)             # ReLU


def fpn2mlp_head(x_flat, roi_scale_flat, w6, b6, w7, b7, *, tm=None, tk=None):
    """x_flat: [N, K], roi_scale_flat: [b, K], w6: [K, H], w7: [H, H] -> [b*N, H]."""
    N, K = x_flat.shape
    B = roi_scale_flat.shape[0]
    H = w6.shape[1]

    TM = tm if tm is not None else (N if N <= 128 else 128)
    TK = tk if tk is not None else (256 if K % 256 == 0 else K)
    # TODO(synk): arbitrary post-NMS proposal counts need padding of N (and K) to
    #             tile multiples plus masking of the padded output rows.
    assert N % TM == 0 and K % TK == 0, (N, TM, K, TK)
    num_m, num_k = N // TM, K // TK
    M = B * N

    cost = pl.CostEstimate(
        flops=2 * M * K * H + 2 * M * H * H,
        transcendentals=0,
        bytes_accessed=(N * K * 2 + B * K * 4 + K * H * 2 + H * 4
                        + H * H * 2 + H * 4 + M * H * 4),
    )

    grid_spec = pltpu.PrefetchScalarGridSpec(
        num_scalar_prefetch=0,
        grid=(num_m, B, num_k),
        in_specs=[
            # x block ignores the support axis -> revisited block stays resident
            # across b; this realizes x.repeat(b,1,1,1) with zero data movement.
            pl.BlockSpec((TM, TK), lambda m, b, k: (m, k)),
            # per-support channel scale; leading support dim squeezed & selected.
            pl.BlockSpec((None, 1, TK), lambda m, b, k: (b, 0, k)),
            pl.BlockSpec((TK, H), lambda m, b, k: (k, 0)),   # fc6 weight
            pl.BlockSpec((1, H), lambda m, b, k: (0, 0)),    # fc6 bias
            pl.BlockSpec((H, H), lambda m, b, k: (0, 0)),    # fc7 weight (grid-invariant)
            pl.BlockSpec((1, H), lambda m, b, k: (0, 0)),    # fc7 bias
        ],
        out_specs=pl.BlockSpec((TM, H), lambda m, b, k: (b * num_m + m, 0)),
        scratch_shapes=[pltpu.VMEM((TM, H), jnp.float32)],
    )

    return pl.pallas_call(
        _mlp_head_kernel,
        out_shape=jax.ShapeDtypeStruct((M, H), jnp.float32),
        grid_spec=grid_spec,
        compiler_params=pltpu.CompilerParams(
            dimension_semantics=("parallel", "parallel", "arbitrary"),
            vmem_limit_bytes=32 * 1024 * 1024,
        ),
        cost_estimate=cost,
    )(
        x_flat.astype(jnp.bfloat16),                         # halves the largest DMA
        roi_scale_flat.reshape(B, 1, K).astype(jnp.float32),
        w6.astype(jnp.bfloat16),                             # MXU-native dtype
        b6.astype(jnp.float32),
        w7.astype(jnp.bfloat16),
        b7.astype(jnp.float32),
    )


# ------------------------- Pooler glue (plain JAX) ---------------------------
def roi_align_single_level(feat, rois, resolution, spatial_scale, sampling_ratio):
    """Single-level ROIAlign (maskrcnn_benchmark semantics), plain JAX glue.

    feat: [C, Hf, Wf] single-image feature map, rois: [N, 4] (x1, y1, x2, y2)
    returns: [N, C, R, R]
    # TODO(synk): multi-level FPN level assignment (LevelMapper) not implemented;
    #             single pooler scale only.
    # TODO(synk): the bilinear gather stays in XLA; kernelizing it (scalar-prefetched
    #             bin indices + DMA'd feature rows feeding the fc6 slab) is the next
    #             end-to-end win at production sizes.
    """
    C, Hf, Wf = feat.shape
    R = resolution
    s = sampling_ratio
    n = rois.shape[0]
    dt = feat.dtype

    x1 = rois[:, 0] * spatial_scale
    y1 = rois[:, 1] * spatial_scale
    x2 = rois[:, 2] * spatial_scale
    y2 = rois[:, 3] * spatial_scale
    roi_w = jnp.maximum(x2 - x1, 1.0)
    roi_h = jnp.maximum(y2 - y1, 1.0)
    bin_w = roi_w / R
    bin_h = roi_h / R

    grid = (jnp.arange(s, dtype=dt) + 0.5) / s                    # [s]
    pooled_idx = jnp.arange(R, dtype=dt)                          # [R]
    ys = y1[:, None, None] + (pooled_idx[None, :, None] + grid[None, None, :]) * bin_h[:, None, None]
    xs = x1[:, None, None] + (pooled_idx[None, :, None] + grid[None, None, :]) * bin_w[:, None, None]

    Y = jnp.broadcast_to(ys[:, :, :, None, None], (n, R, s, R, s))
    X = jnp.broadcast_to(xs[:, None, None, :, :], (n, R, s, R, s))

    valid = (Y >= -1.0) & (Y <= Hf) & (X >= -1.0) & (X <= Wf)
    y = jnp.clip(Y, 0.0, Hf - 1)
    x = jnp.clip(X, 0.0, Wf - 1)
    y0 = jnp.floor(y).astype(jnp.int32)
    x0 = jnp.floor(x).astype(jnp.int32)
    y1i = jnp.minimum(y0 + 1, Hf - 1)
    x1i = jnp.minimum(x0 + 1, Wf - 1)
    ly = y - y0.astype(dt)
    lx = x - x0.astype(dt)
    hy = 1.0 - ly
    hx = 1.0 - lx

    def g(yi, xi):
        return feat[:, yi, xi]                                    # [C, N, R, s, R, s]

    vals = (g(y0, x0) * (hy * hx) + g(y0, x1i) * (hy * lx)
            + g(y1i, x0) * (ly * hx) + g(y1i, x1i) * (ly * lx))
    vals = vals * valid.astype(dt)[None]
    pooled = vals.mean(axis=(3, 5))                               # [C, N, R, R]
    return jnp.transpose(pooled, (1, 0, 2, 3))                    # [N, C, R, R]


# -------------------------- Full forward (eval path) -------------------------
def fpn2mlp_feature_extractor_forward(x_fpn, proposals, roi_s, params, *,
                                      resolution, spatial_scale, sampling_ratio):
    """Eval-branch forward of FPN2MLPFeatureExtractor.

    # TODO(synk): training branch (randint-based prototype-label remapping) is
    #             nondeterministic and data-dependent; only the eval path is kernelized.
    """
    feat = x_fpn[0][0]                                            # [C, Hf, Wf]
    pooled = roi_align_single_level(feat, proposals, resolution, spatial_scale, sampling_ratio)
    N, C, R, _ = pooled.shape

    # adaptive_avg_pool2d(roi_s, 1) -> [b, C]  (tiny reduction, kept as glue)
    roi_mean = roi_s.mean(axis=(2, 3))                            # [b, C]
    # expand per-channel scale to the NCHW-flatten layout: k = c*R*R + h*R + w
    scale_flat = jnp.repeat(roi_mean, R * R, axis=1)              # [b, C*R*R]

    x_flat = pooled.reshape(N, C * R * R)                         # PyTorch x.view(N, -1)
    w6, b6, w7, b7 = params
    return fpn2mlp_head(x_flat, scale_flat, w6, b6, w7, b7)       # [b*N, H]


# ----------------------------------- main ------------------------------------
if __name__ == "__main__":
    # Synthetic config (small): in_channels=32, POOLER_RESOLUTION=4,
    # POOLER_SCALES=(0.25,), POOLER_SAMPLING_RATIO=2, MLP_HEAD_DIM=128, USE_GN=False.
    C, R = 32, 4
    SCALE, SAMPLING = 0.25, 2
    H = 128                                                        # representation_size
    K = C * R * R                                                  # fc6 input size (512)
    N = 8                                                          # number of proposals
    B = 2                                                          # number of support ROIs (roi_s)
    HF = WF = 16                                                   # feature-map spatial size

    key = jax.random.PRNGKey(0)
    k_feat, k_box1, k_box2, k_roi, k_w6, k_w7 = jax.random.split(key, 6)

    # FPN features (one level), NCHW like PyTorch.
    x_fpn = [jax.random.normal(k_feat, (1, C, HF, WF), dtype=jnp.float32)]

    # Proposals (x1, y1, x2, y2) in image coordinates (image size 64).
    xy = jax.random.uniform(k_box1, (N, 2), minval=0.0, maxval=44.0)
    wh = jax.random.uniform(k_box2, (N, 2), minval=4.0, maxval=18.0)
    proposals = jnp.concatenate([xy, xy + wh], axis=1).astype(jnp.float32)   # [N, 4]

    # meta_data['roi_box'][1]  (support prototypes); channel count matches in_channels.
    roi_s = jax.random.normal(k_roi, (B, C, 4, 4), dtype=jnp.float32)

    # make_fc(input_size, representation_size, use_gn=False):
    #   kaiming_uniform_(W, a=1) -> U(-sqrt(3/fan_in), sqrt(3/fan_in)); bias = 0.
    bound6 = (3.0 / K) ** 0.5
    bound7 = (3.0 / H) ** 0.5
    w6 = jax.random.uniform(k_w6, (K, H), minval=-bound6, maxval=bound6, dtype=jnp.float32)  # fc6.weight.T
    b6 = jnp.zeros((1, H), dtype=jnp.float32)
    w7 = jax.random.uniform(k_w7, (H, H), minval=-bound7, maxval=bound7, dtype=jnp.float32)  # fc7.weight.T
    b7 = jnp.zeros((1, H), dtype=jnp.float32)
    params = (w6, b6, w7, b7)

    out = fpn2mlp_feature_extractor_forward(
        x_fpn, proposals, roi_s, params,
        resolution=R, spatial_scale=SCALE, sampling_ratio=SAMPLING)
    out = jax.block_until_ready(out)
    assert out.shape == (B * N, H), out.shape

    # Pure-JAX f32 reference of the kernelized part (repeat / scale / fc6 / fc7).
    # The kernel feeds the MXU bf16 operands (x input, scaled block, hidden, weights)
    # with f32 accumulation, so tolerances are the bf16 class (~1e-2 relative);
    # measured error at these magnitudes is ~1e-3.
    pooled_ref = roi_align_single_level(x_fpn[0][0], proposals, R, SCALE, SAMPLING)
    x_flat_ref = pooled_ref.reshape(N, K)
    roi_mean_ref = roi_s.mean(axis=(2, 3))
    scale_rows = jnp.repeat(jnp.repeat(roi_mean_ref, R * R, axis=1), N, axis=0)   # [B*N, K]
    x_rep = jnp.tile(x_flat_ref, (B, 1))                                          # [B*N, K]
    h_ref = jnp.maximum((x_rep * scale_rows) @ w6 + b6, 0.0)
    ref = jnp.maximum(h_ref @ w7 + b7, 0.0)

    err = float(jnp.max(jnp.abs(out - ref)))
    assert jnp.allclose(out, ref, rtol=2e-2, atol=2e-2), err
    print("KERNEL_OK")
</pallas_src>

<mosaic_0001>
module attributes {stable_mosaic.version = 11 : i64} {
  func.func @_mlp_head_kernel(%arg0: i32, %arg1: i32, %arg2: i32, %arg3: memref<8x256xbf16, #tpu.memory_space<vmem>>, %arg4: memref<1x1x256xf32, #tpu.memory_space<vmem>>, %arg5: memref<256x128xbf16, #tpu.memory_space<vmem>>, %arg6: memref<1x128xf32, #tpu.memory_space<vmem>>, %arg7: memref<128x128xbf16, #tpu.memory_space<vmem>>, %arg8: memref<1x128xf32, #tpu.memory_space<vmem>>, %arg9: memref<8x128xf32, #tpu.memory_space<vmem>>, %arg10: memref<8x128xf32, #tpu.memory_space<vmem>>) attributes {dimension_semantics = [#tpu.dimension_semantics<parallel>, #tpu.dimension_semantics<parallel>, #tpu.dimension_semantics<arbitrary>], iteration_bounds = array<i64: 1, 2, 2>, scalar_prefetch = 0 : i64, scratch_operands = 1 : i64, tpu.core_type = #tpu.core_type<tc>, window_params = [{transform_indices = @transform_0, window_bounds = array<i64: 8, 256>}, {transform_indices = @transform_1, window_bounds = array<i64: 1, 1, 256>}, {transform_indices = @transform_2, window_bounds = array<i64: 256, 128>}, {pipeline_mode = #tpu.pipeline_mode<synchronous>, transform_indices = @transform_3, window_bounds = array<i64: 1, 128>}, {pipeline_mode = #tpu.pipeline_mode<synchronous>, transform_indices = @transform_4, window_bounds = array<i64: 128, 128>}, {pipeline_mode = #tpu.pipeline_mode<synchronous>, transform_indices = @transform_5, window_bounds = array<i64: 1, 128>}, {transform_indices = @transform_6, window_bounds = array<i64: 8, 128>}]} {
    %c0_i32 = arith.constant 0 : i32
    %0 = arith.cmpi eq, %arg2, %c0_i32 : i32
    %1 = arith.extui %0 : i1 to i32
    %c0_i32_0 = arith.constant 0 : i32
    %2 = arith.cmpi ne, %1, %c0_i32_0 : i32
    scf.if %2 {
      %cst_12 = arith.constant 0.000000e+00 : f32
      %18 = vector.broadcast %cst_12 : f32 to vector<8x128xf32>
      %c0_13 = arith.constant 0 : index
      %c0_14 = arith.constant 0 : index
      %19 = vector.load %arg10[%c0_13, %c0_14] : memref<8x128xf32, #tpu.memory_space<vmem>>, vector<8x128xf32>
      tpu.vector_store %arg10[%c0_13, %c0_14], %18 {strides = array<i32>} : memref<8x128xf32, #tpu.memory_space<vmem>>, vector<8x128xf32>,
    } else {
    }
    %c0 = arith.constant 0 : index
    %c0_1 = arith.constant 0 : index
    %3 = vector.load %arg3[%c0, %c0_1] : memref<8x256xbf16, #tpu.memory_space<vmem>>, vector<8x256xbf16>
    %4 = arith.extf %3 : vector<8x256xbf16> to vector<8x256xf32>
    %c0_2 = arith.constant 0 : index
    %c0_3 = arith.constant 0 : index
    %c0_4 = arith.constant 0 : index
    %5 = vector.load %arg4[%c0_2, %c0_3, %c0_4] : memref<1x1x256xf32, #tpu.memory_space<vmem>>, vector<1x1x256xf32>
    %6 = vector.shape_cast %5 : vector<1x1x256xf32> to vector<1x256xf32>
    %7 = vector.broadcast %6 : vector<1x256xf32> to vector<8x256xf32>
    %8 = arith.mulf %4, %7 : vector<8x256xf32>
    %9 = arith.truncf %8 : vector<8x256xf32> to vector<8x256xbf16>
    %c0_5 = arith.constant 0 : index
    %c0_6 = arith.constant 0 : index
    %10 = vector.load %arg10[%c0_5, %c0_6] : memref<8x128xf32, #tpu.memory_space<vmem>>, vector<8x128xf32>
    %c0_7 = arith.constant 0 : index
    %c0_8 = arith.constant 0 : index
    %11 = vector.load %arg5[%c0_7, %c0_8] : memref<256x128xbf16, #tpu.memory_space<vmem>>, vector<256x128xbf16>
    %cst = arith.constant dense<0.000000e+00> : vector<8x128xf32>
    %12 = tpu.matmul %9, %11, %cst {dimension_numbers = #tpu.dot_dimension_numbers<[1], [0], [0], [1], [0, 0, 1, 1], [], []>} : vector<8x256xbf16>, vector<256x128xbf16>, vector<8x128xf32> -> vector<8x128xf32>
    %13 = arith.addf %10, %12 : vector<8x128xf32>
    %c0_9 = arith.constant 0 : index
    %c0_10 = arith.constant 0 : index
    %14 = vector.load %arg10[%c0_9, %c0_10] : memref<8x128xf32, #tpu.memory_space<vmem>>, vector<8x128xf32>
    tpu.vector_store %arg10[%c0_9, %c0_10], %13 {strides = array<i32>} : memref<8x128xf32, #tpu.memory_space<vmem>>, vector<8x128xf32>,
    %c1_i32 = arith.constant 1 : i32
    %15 = arith.cmpi eq, %arg2, %c1_i32 : i32
    %16 = arith.extui %15 : i1 to i32
    %c0_i32_11 = arith.constant 0 : i32
    %17 = arith.cmpi ne, %16, %c0_i32_11 : i32
    scf.if %17 {
      %c0_12 = arith.constant 0 : index
      %c0_13 = arith.constant 0 : index
      %18 = vector.load %arg10[%c0_12, %c0_13] : memref<8x128xf32, #tpu.memory_space<vmem>>, vector<8x128xf32>
      %c0_14 = arith.constant 0 : index
      %c0_15 = arith.constant 0 : index
      %19 = vector.load %arg6[%c0_14, %c0_15] : memref<1x128xf32, #tpu.memory_space<vmem>>, vector<1x128xf32>
      %20 = vector.broadcast %19 : vector<1x128xf32> to vector<8x128xf32>
      %21 = arith.addf %18, %20 : vector<8x128xf32>
      %cst_16 = arith.constant 0.000000e+00 : f32
      %22 = vector.broadcast %cst_16 : f32 to vector<8x128xf32>
      %23 = arith.maximumf %21, %22 : vector<8x128xf32>
      %24 = arith.truncf %23 : vector<8x128xf32> to vector<8x128xbf16>
      %c0_17 = arith.constant 0 : index
      %c0_18 = arith.constant 0 : index
      %25 = vector.load %arg7[%c0_17, %c0_18] : memref<128x128xbf16, #tpu.memory_space<vmem>>, vector<128x128xbf16>
      %cst_19 = arith.constant dense<0.000000e+00> : vector<8x128xf32>
      %26 = tpu.matmul %24, %25, %cst_19 {dimension_numbers = #tpu.dot_dimension_numbers<[1], [0], [0], [1], [0, 0, 1, 1], [], []>} : vector<8x128xbf16>, vector<128x128xbf16>, vector<8x128xf32> -> vector<8x128xf32>
      %c0_20 = arith.constant 0 : index
      %c0_21 = arith.constant 0 : index
      %27 = vector.load %arg8[%c0_20, %c0_21] : memref<1x128xf32, #tpu.memory_space<vmem>>, vector<1x128xf32>
      %28 = vector.broadcast %27 : vector<1x128xf32> to vector<8x128xf32>
      %29 = arith.addf %26, %28 : vector<8x128xf32>
      %cst_22 = arith.constant 0.000000e+00 : f32
      %30 = vector.broadcast %cst_22 : f32 to vector<8x128xf32>
      %31 = arith.maximumf %29, %30 : vector<8x128xf32>
      %c0_23 = arith.constant 0 : index
      %c0_24 = arith.constant 0 : index
      %32 = vector.load %arg9[%c0_23, %c0_24] : memref<8x128xf32, #tpu.memory_space<vmem>>, vector<8x128xf32>
      tpu.vector_store %arg9[%c0_23, %c0_24], %31 {strides = array<i32>} : memref<8x128xf32, #tpu.memory_space<vmem>>, vector<8x128xf32>,
    } else {
    }
    return
  }
  func.func @transform_0(%arg0: i32, %arg1: i32, %arg2: i32) -> (i32, i32) {
    %c0_i32 = arith.constant 0 : i32
    return %arg0, %arg2 : i32, i32
  }
  func.func @transform_1(%arg0: i32, %arg1: i32, %arg2: i32) -> (i32, i32, i32) {
    %c0_i32 = arith.constant 0 : i32
    %c0_i32_0 = arith.constant 0 : i32
    return %arg1, %c0_i32, %arg2 : i32, i32, i32
  }
  func.func @transform_2(%arg0: i32, %arg1: i32, %arg2: i32) -> (i32, i32) {
    %c0_i32 = arith.constant 0 : i32
    %c0_i32_0 = arith.constant 0 : i32
    return %arg2, %c0_i32 : i32, i32
  }
  func.func @transform_3(%arg0: i32, %arg1: i32, %arg2: i32) -> (i32, i32) {
    %c0_i32 = arith.constant 0 : i32
    %c0_i32_0 = arith.constant 0 : i32
    %c0_i32_1 = arith.constant 0 : i32
    return %c0_i32, %c0_i32_0 : i32, i32
  }
  func.func @transform_4(%arg0: i32, %arg1: i32, %arg2: i32) -> (i32, i32) {
    %c0_i32 = arith.constant 0 : i32
    %c0_i32_0 = arith.constant 0 : i32
    %c0_i32_1 = arith.constant 0 : i32
    return %c0_i32, %c0_i32_0 : i32, i32
  }
  func.func @transform_5(%arg0: i32, %arg1: i32, %arg2: i32) -> (i32, i32) {
    %c0_i32 = arith.constant 0 : i32
    %c0_i32_0 = arith.constant 0 : i32
    %c0_i32_1 = arith.constant 0 : i32
    return %c0_i32, %c0_i32_0 : i32, i32
  }
  func.func @transform_6(%arg0: i32, %arg1: i32, %arg2: i32) -> (i32, i32) {
    %c1_i32 = arith.constant 1 : i32
    %0 = arith.muli %arg1, %c1_i32 : i32
    %1 = arith.addi %0, %arg0 : i32
    %c0_i32 = arith.constant 0 : i32
    %c0_i32_0 = arith.constant 0 : i32
    return %1, %c0_i32 : i32, i32
  }
}

</mosaic_0001>

<llo_original>
// kernel: tpu_custom_call.1
$region0: #{tpu_custom_call.1}
  #allocation0 [shape = 'u32[]', space=smem, size = 0x4, offset = 0x4, fixed_abs, tag = 'smem constant byte address 0x4 - core index']
  #allocation1 [shape = 'u32[144,128]{1,0:T(1,128)}', space=vmem, size = 0x12000, scoped, tag = 'internal scratch']
  #allocation2 [shape = 'f32[8,128]{1,0:T(8,128)}', space=vmem, size = 0x1000, scoped, tag = 'scratch operand']
  %s0 = inlined_call_operand.hbm [shape: bf16[8,512], index: 0, kind: input, shape index: {}]
  %s1 = inlined_call_operand.hbm [shape: f32[2,1,512], index: 1, kind: input, shape index: {}]
  %s2 = inlined_call_operand.hbm [shape: bf16[512,128], index: 2, kind: input, shape index: {}]
  %s3 = inlined_call_operand.vmem [shape: f32[1,128], index: 3, kind: input, shape index: {}]
  %s4 = inlined_call_operand.hbm [shape: bf16[128,128], index: 4, kind: input, shape index: {}]
  %s5 = inlined_call_operand.vmem [shape: f32[1,128], index: 5, kind: input, shape index: {}]
  %s6 = inlined_call_operand.hbm [shape: f32[16,128], index: 6, kind: output, shape index: {}]
  %s7 = sld [smem:[#allocation0]]
  $region81: #{tpu_custom_call.1} parent=0
    _
  %s9 = ssub.s32 1, %s7
  %s10 = scalar_select 0, %s9, %s7
  $region1: #{tpu_custom_call.1} parent=0
    #allocation3 [shape = 'u8[8192]{0}', space=vmem, size = 0x2000, scoped, tag = 'input window, operand 0']
    #allocation4 [shape = 's32[2]{0}', space=sflag, size = 0x8, scoped, tag = 'scoped memory for tpu_custom_call.1']
    #allocation5 [shape = 's32[2]{0}', space=sflag, size = 0x8, scoped, tag = 'scoped memory for tpu_custom_call.1']
    #allocation6 [shape = 'u8[2048]{0}', space=vmem, size = 0x800, scoped, tag = 'input window, operand 1']
    #allocation7 [shape = 's32[2]{0}', space=sflag, size = 0x8, scoped, tag = 'scoped memory for tpu_custom_call.1']
    #allocation8 [shape = 'u8[131072]{0}', space=vmem, size = 0x20000, scoped, tag = 'input window, operand 2']
    #allocation9 [shape = 'u8[32768]{0}', space=vmem, size = 0x8000, scoped, tag = 'input window, operand 4, single buffered']
    #allocation10 [shape = 's32[1]{0}', space=sflag, size = 0x4, scoped, tag = 'scoped memory for tpu_custom_call.1']
    #allocation11 [shape = 'u8[8192]{0}', space=vmem, size = 0x2000, scoped, tag = 'output window, operand 0']
    %11 = vsyncpa [#allocation4], 0
    %s12 = scalar_lea.sflag [#allocation4], 1
    %13 = vsyncpa %s12, 0
    %14 = vsyncpa [#allocation7], 0
    %s15 = scalar_lea.sflag [#allocation7], 1
    %16 = vsyncpa %s15, 0
    %17 = vsyncpa [#allocation10], 0
    %18 = vsyncpa [#allocation5], 0
    %s19 = scalar_lea.sflag [#allocation5], 1
    %20 = vsyncpa %s19, 0
    loop: start=0, step=1, limit=6
    $region2: #{tpu_custom_call.1} parent=1 // loop_pre_header
      _
    $region3: #{tpu_custom_call.1} parent=1 // loop_header
      %s22 = sphi 0, %s26
      %p23 = scmp.ge.s32.totalorder %s22, 6
      %s29 = sphi 0, %s48
      %s30 = sphi 0, %s44
      %s31 = sphi 0, %s40
      %s32 = sphi 0, %s29
      %s33 = sphi 0, %s30
      %s34 = sphi 0, %s31
      %s35 = sphi 0, %s32
      %s36 = sphi 0, %s33
      %s37 = sphi 0, %s34
      %s53 = sphi 0, %s55
      %s56 = sphi 0, %s53
      %s57 = sphi 0, %s56
      %s73 = sphi 0, %s57
      %s81 = sphi 0, %s83
      %s84 = sphi 0, %s81
      %s85 = sphi 0, %s84
      %s101 = sphi 0, %s85
      %s107 = sphi 0, %s109
      %s110 = sphi 0, %s107
      %s111 = sphi 0, %s110
      %s127 = sphi 0, %s111
      %s131 = sphi 0, %s131
      %s133 = sphi 0, %s131
      %s134 = sphi 0, %s133
      %s148 = sphi 0, %s134
      %s152 = sphi 0, %s152
      %s154 = sphi 0, %s152
      %s155 = sphi 0, %s154
      %s169 = sphi 0, %s155
      %s173 = sphi 0, %s173
      %s175 = sphi 0, %s173
      %s176 = sphi 0, %s175
      %s190 = sphi 0, %s176
      %s198 = sphi 0, %s200
      %s201 = sphi 0, %s198
      %s202 = sphi 0, %s201
      %s218 = sphi 0, %s202
    $region4: #{tpu_custom_call.1} parent=1 // loop_header_branch
      %25 = sbr.rel (%p23) target = $region8
    $region5: #{tpu_custom_call.1} parent=1 // loop_body
      %s27 = ssub.s32 %s22, 1
      %s28 = ssub.s32 %s22, 2
      %s38 = sadd.s32 1, %s31
      %p39 = scmp.ge.s32.totalorder %s38, 2
      %s40 = scalar_select %p39, 0, %s38
      %s41 = sadd.s32 1, %s30
      %s42 = scalar_select %p39, %s41, %s30
      %p43 = scmp.ge.s32.totalorder %s42, 2
      %s44 = scalar_select %p43, 0, %s42
      %s45 = sadd.s32 1, %s29
      %s46 = scalar_select %p43, %s45, %s29
      %p47 = scmp.ge.s32.totalorder %s46, 1
      %s48 = scalar_select %p47, 0, %s46
      %s49 = ssub.s32 %s29, %s48
      %s50 = ssub.s32 %s31, %s40
      %s51 = sor.u32 %s49, %s50
      %p52 = scmp.eq.s32.totalorder %s51, 0
      %s54 = sadd.s32 %s53, 1
      %s55 = scalar_select %p52, %s53, %s54
      %p58 = pneg %p52
      %p59 = scmp.eq.s32.totalorder %s22, 3
      %p60 = por %p58, %p59
      %p61 = scmp.ne.s32.totalorder %s53, %s56
      %p62 = scmp.eq.s32.totalorder %s22, 0
      %p63 = por %p61, %p62
      %p64 = scmp.ne.s32.totalorder %s53, %s56
      %p65 = scmp.eq.s32.totalorder %s27, 3
      %p66 = por %p64, %p65
      %p67 = scmp.ne.s32.totalorder %s56, %s57
      %p68 = scmp.eq.s32.totalorder %s27, 0
      %p69 = por %p67, %p68
      %p70 = scmp.ne.s32.totalorder %s56, %s57
      %p71 = scmp.eq.s32.totalorder %s28, 3
      %p72 = por %p70, %p71
      %p74 = scmp.ne.s32.totalorder %s57, %s73
      %p75 = scmp.eq.s32.totalorder %s28, 0
      %p76 = por %p74, %p75
      %s77 = ssub.s32 %s30, %s44
      %s78 = ssub.s32 %s31, %s40
      %s79 = sor.u32 %s77, %s78
      %p80 = scmp.eq.s32.totalorder %s79, 0
      %s82 = sadd.s32 %s81, 1
      %s83 = scalar_select %p80, %s81, %s82
      %p86 = pneg %p80
      %p87 = scmp.eq.s32.totalorder %s22, 3
      %p88 = por %p86, %p87
      %p89 = scmp.ne.s32.totalorder %s81, %s84
      %p90 = scmp.eq.s32.totalorder %s22, 0
      %p91 = por %p89, %p90
      %p92 = scmp.ne.s32.totalorder %s81, %s84
      %p93 = scmp.eq.s32.totalorder %s27, 3
      %p94 = por %p92, %p93
      %p95 = scmp.ne.s32.totalorder %s84, %s85
      %p96 = scmp.eq.s32.totalorder %s27, 0
      %p97 = por %p95, %p96
      %p98 = scmp.ne.s32.totalorder %s84, %s85
      %p99 = scmp.eq.s32.totalorder %s28, 3
      %p100 = por %p98, %p99
      %p102 = scmp.ne.s32.totalorder %s85, %s101
      %p103 = scmp.eq.s32.totalorder %s28, 0
      %p104 = por %p102, %p103
      %s105 = ssub.s32 %s31, %s40
      %p106 = scmp.eq.s32.totalorder %s105, 0
      %s108 = sadd.s32 %s107, 1
      %s109 = scalar_select %p106, %s107, %s108
      %p112 = pneg %p106
      %p113 = scmp.eq.s32.totalorder %s22, 3
      %p114 = por %p112, %p113
      %p115 = scmp.ne.s32.totalorder %s107, %s110
      %p116 = scmp.eq.s32.totalorder %s22, 0
      %p117 = por %p115, %p116
      %p118 = scmp.ne.s32.totalorder %s107, %s110
      %p119 = scmp.eq.s32.totalorder %s27, 3
      %p120 = por %p118, %p119
      %p121 = scmp.ne.s32.totalorder %s110, %s111
      %p122 = scmp.eq.s32.totalorder %s27, 0
      %p123 = por %p121, %p122
      %p124 = scmp.ne.s32.totalorder %s110, %s111
      %p125 = scmp.eq.s32.totalorder %s28, 3
      %p126 = por %p124, %p125
      %p128 = scmp.ne.s32.totalorder %s111, %s127
      %p129 = scmp.eq.s32.totalorder %s28, 0
      %p130 = por %p128, %p129
      %s132 = sadd.s32 %s131, 1
      %p135 = scmp.eq.s32.totalorder %s22, 3
      %p136 = scmp.ne.s32.totalorder %s131, %s133
      %p137 = scmp.eq.s32.totalorder %s22, 0
      %p138 = por %p136, %p137
      %p139 = scmp.ne.s32.totalorder %s131, %s133
      %p140 = scmp.eq.s32.totalorder %s27, 3
      %p141 = por %p139, %p140
      %p142 = scmp.ne.s32.totalorder %s133, %s134
      %p143 = scmp.eq.s32.totalorder %s27, 0
      %p144 = por %p142, %p143
      %p145 = scmp.ne.s32.totalorder %s133, %s134
      %p146 = scmp.eq.s32.totalorder %s28, 3
      %p147 = por %p145, %p146
      %p149 = scmp.ne.s32.totalorder %s134, %s148
      %p150 = scmp.eq.s32.totalorder %s28, 0
      %p151 = por %p149, %p150
      %s153 = sadd.s32 %s152, 1
      %p156 = scmp.eq.s32.totalorder %s22, 3
      %p157 = scmp.ne.s32.totalorder %s152, %s154
      %p158 = scmp.eq.s32.totalorder %s22, 0
      %p159 = por %p157, %p158
      %p160 = scmp.ne.s32.totalorder %s152, %s154
      %p161 = scmp.eq.s32.totalorder %s27, 3
      %p162 = por %p160, %p161
      %p163 = scmp.ne.s32.totalorder %s154, %s155
      %p164 = scmp.eq.s32.totalorder %s27, 0
      %p165 = por %p163, %p164
      %p166 = scmp.ne.s32.totalorder %s154, %s155
      %p167 = scmp.eq.s32.totalorder %s28, 3
      %p168 = por %p166, %p167
      %p170 = scmp.ne.s32.totalorder %s155, %s169
      %p171 = scmp.eq.s32.totalorder %s28, 0
      %p172 = por %p170, %p171
      %s174 = sadd.s32 %s173, 1
      %p177 = scmp.eq.s32.totalorder %s22, 3
      %p178 = scmp.ne.s32.totalorder %s173, %s175
      %p179 = scmp.eq.s32.totalorder %s22, 0
      %p180 = por %p178, %p179
      %p181 = scmp.ne.s32.totalorder %s173, %s175
      %p182 = scmp.eq.s32.totalorder %s27, 3
      %p183 = por %p181, %p182
      %p184 = scmp.ne.s32.totalorder %s175, %s176
      %p185 = scmp.eq.s32.totalorder %s27, 0
      %p186 = por %p184, %p185
      %p187 = scmp.ne.s32.totalorder %s175, %s176
      %p188 = scmp.eq.s32.totalorder %s28, 3
      %p189 = por %p187, %p188
      %p191 = scmp.ne.s32.totalorder %s176, %s190
      %p192 = scmp.eq.s32.totalorder %s28, 0
      %p193 = por %p191, %p192
      %s194 = sadd.s32 %s30, %s29
      %s195 = sadd.s32 %s44, %s48
      %s196 = ssub.s32 %s194, %s195
      %p197 = scmp.eq.s32.totalorder %s196, 0
      %s199 = sadd.s32 %s198, 1
      %s200 = scalar_select %p197, %s198, %s199
      %p203 = pneg %p197
      %p204 = scmp.eq.s32.totalorder %s22, 3
      %p205 = por %p203, %p204
      %p206 = scmp.ne.s32.totalorder %s198, %s201
      %p207 = scmp.eq.s32.totalorder %s22, 0
      %p208 = por %p206, %p207
      %p209 = scmp.ne.s32.totalorder %s198, %s201
      %p210 = scmp.eq.s32.totalorder %s27, 3
      %p211 = por %p209, %p210
      %p212 = scmp.ne.s32.totalorder %s201, %s202
      %p213 = scmp.eq.s32.totalorder %s27, 0
      %p214 = por %p212, %p213
      %p215 = scmp.ne.s32.totalorder %s201, %s202
      %p216 = scmp.eq.s32.totalorder %s28, 3
      %p217 = por %p215, %p216
      %p219 = scmp.ne.s32.totalorder %s202, %s218
      %p220 = scmp.eq.s32.totalorder %s28, 0
      %p221 = por %p219, %p220
      %p222 = scmp.le.s32.totalorder 1, %s22
      %p223 = scmp.lt.s32.totalorder %s22, 5
      %p224 = pnand %p222, %p223
      %p225 = pneg %p224
      // Predicated region
      $region9: #{tpu_custom_call.1} parent=5 // pred_check
        _
      $region10: #{tpu_custom_call.1} parent=5 // pred_check_branch
        %227 = sbr.rel (%p224) target = $region12
      $region11: #{tpu_custom_call.1} parent=5 // pred_region
        %s228 = ssub.s32 %s22, 1
        // Predicated region
        $region13: #{tpu_custom_call.1} parent=11 // pred_check
          %p229 = pneg %p144
        $region14: #{tpu_custom_call.1} parent=11 // pred_check_branch
          %231 = sbr.rel (%p229) target = $region16
        $region15: #{tpu_custom_call.1} parent=11 // pred_region
          _
        $region16: #{tpu_custom_call.1} parent=11 // pred_fallthru
          _
        // Predicated region
        $region17: #{tpu_custom_call.1} parent=11 // pred_check
          %p232 = pneg %p165
        $region18: #{tpu_custom_call.1} parent=11 // pred_check_branch
          %234 = sbr.rel (%p232) target = $region20
        $region19: #{tpu_custom_call.1} parent=11 // pred_region
          %s236 = ssub.s32 1024, 1024
          %237 = vsyncadd [#allocation10], %s236
          %s238 = sshll.u32 [#allocation9], 4
          %s239 = int_to_ptr.vmem [resolvable:$true] %s238
          %244 = dma.hbm_to_vmem [thread:$0]  %s4, 1024, %s239, [#allocation10], 64, 64, 4
        $region20: #{tpu_custom_call.1} parent=11 // pred_fallthru
          _
        // Predicated region
        $region21: #{tpu_custom_call.1} parent=11 // pred_check
          %p245 = pneg %p186
        $region22: #{tpu_custom_call.1} parent=11 // pred_check_branch
          %247 = sbr.rel (%p245) target = $region24
        $region23: #{tpu_custom_call.1} parent=11 // pred_region
          _
        $region24: #{tpu_custom_call.1} parent=11 // pred_fallthru
          _
      $region12: #{tpu_custom_call.1} parent=5 // pred_fallthru
        _
      %p248 = scmp.lt.s32.totalorder %s22, 4
      // Predicated region
      $region25: #{tpu_custom_call.1} parent=5 // pred_check
        %p249 = pneg %p248
      $region26: #{tpu_custom_call.1} parent=5 // pred_check_branch
        %251 = sbr.rel (%p249) target = $region28
      $region27: #{tpu_custom_call.1} parent=5 // pred_region
        // Predicated region
        $region29: #{tpu_custom_call.1} parent=27 // pred_check
          %p252 = pneg %p63
        $region30: #{tpu_custom_call.1} parent=27 // pred_check_branch
          %254 = sbr.rel (%p252) target = $region32
        $region31: #{tpu_custom_call.1} parent=27 // pred_region
          %s255 = sand.u32 %s53, 1
          %s256 = scalar_lea.sflag [#allocation4], %s255
          %s257 = sand.u32 %s53, 1
          %s258 = smul.addr %s257, 8
          %s259 = scalar_lea.vmem [#allocation3], %s258
          %s260 = smul.u32 2, %s31
          %s262 = ssub.s32 128, 128
          %263 = vsyncadd %s256, %s262
          %s264 = smul.addr %s29, 4
          %s265 = sadd.s32 %s260, %s264
          %s266 = smul.addr %s265, 64
          %s267 = scalar_lea.hbm %s0, %s266
          %s269 = sshll.u32 %s259, 4
          %s270 = int_to_ptr.vmem [resolvable:$true] %s269
          %272 = dma.hbm_to_vmem [thread:$0]  %s267, 128, %s270, %s256
        $region32: #{tpu_custom_call.1} parent=27 // pred_fallthru
          _
        // Predicated region
        $region33: #{tpu_custom_call.1} parent=27 // pred_check
          %p273 = pneg %p91
        $region34: #{tpu_custom_call.1} parent=27 // pred_check_branch
          %275 = sbr.rel (%p273) target = $region36
        $region35: #{tpu_custom_call.1} parent=27 // pred_region
          %s276 = sand.u32 %s22, 1
          %s277 = scalar_lea.sflag [#allocation7], %s276
          %s278 = sand.u32 %s81, 1
          %s279 = smul.addr %s278, 2
          %s280 = scalar_lea.vmem [#allocation6], %s279
          %s281 = smul.u32 2, %s31
          %s283 = ssub.s32 32, 32
          %284 = vsyncadd %s277, %s283
          %s285 = smul.addr %s30, 4
          %s286 = sadd.s32 %s281, %s285
          %s287 = smul.addr %s286, 16
          %s288 = scalar_lea.hbm %s1, %s287
          %s290 = sshll.u32 %s280, 4
          %s291 = int_to_ptr.vmem [resolvable:$true] %s290
          %293 = dma.hbm_to_vmem [thread:$0]  %s288, 32, %s291, %s277
        $region36: #{tpu_custom_call.1} parent=27 // pred_fallthru
          _
        // Predicated region
        $region37: #{tpu_custom_call.1} parent=27 // pred_check
          %p294 = pneg %p117
        $region38: #{tpu_custom_call.1} parent=27 // pred_check_branch
          %296 = sbr.rel (%p294) target = $region40
        $region39: #{tpu_custom_call.1} parent=27 // pred_region
          %s297 = sand.u32 %s22, 1
          %s298 = scalar_lea.sflag [#allocation7], %s297
          %s299 = sand.u32 %s107, 1
          %s300 = smul.addr %s299, 128
          %s301 = scalar_lea.vmem [#allocation8], %s300
          %s302 = smul.u32 32, %s31
          %s304 = ssub.s32 2048, 2048
          %305 = vsyncadd %s298, %s304
          %s306 = smul.addr %s302, 64
          %s307 = scalar_lea.hbm %s2, %s306
          %s308 = sshll.u32 %s301, 4
          %s309 = int_to_ptr.vmem [resolvable:$true] %s308
          %314 = dma.hbm_to_vmem [thread:$0]  %s307, 2048, %s309, %s298, 64, 64, 4
        $region40: #{tpu_custom_call.1} parent=27 // pred_fallthru
          _
      $region28: #{tpu_custom_call.1} parent=5 // pred_fallthru
        _
      %p315 = scmp.le.s32.totalorder 1, %s22
      %p316 = scmp.lt.s32.totalorder %s22, 5
      %p317 = pnand %p315, %p316
      %p318 = pneg %p317
      // Predicated region
      $region41: #{tpu_custom_call.1} parent=5 // pred_check
        _
      $region42: #{tpu_custom_call.1} parent=5 // pred_check_branch
        %320 = sbr.rel (%p317) target = $region44
      $region43: #{tpu_custom_call.1} parent=5 // pred_region
        %s321 = ssub.s32 %s22, 1
        %s322 = sand.u32 %s56, 1
        %s323 = scalar_lea.sflag [#allocation4], %s322
        %s324 = sand.u32 %s56, 1
        %s325 = smul.addr %s324, 8
        %s326 = scalar_lea.vmem [#allocation3], %s325
        // Predicated region
        $region45: #{tpu_custom_call.1} parent=43 // pred_check
          %p327 = pneg %p69
        $region46: #{tpu_custom_call.1} parent=43 // pred_check_branch
          %329 = sbr.rel (%p327) target = $region48
        $region47: #{tpu_custom_call.1} parent=43 // pred_region
          %330 = dma.done %s323, 128
        $region48: #{tpu_custom_call.1} parent=43 // pred_fallthru
          _
        %s331 = sand.u32 %s27, 1
        %s332 = scalar_lea.sflag [#allocation7], %s331
        %s333 = sand.u32 %s84, 1
        %s334 = smul.addr %s333, 2
        %s335 = scalar_lea.vmem [#allocation6], %s334
        // Predicated region
        $region49: #{tpu_custom_call.1} parent=43 // pred_check
          %p336 = pneg %p97
        $region50: #{tpu_custom_call.1} parent=43 // pred_check_branch
          %338 = sbr.rel (%p336) target = $region52
        $region51: #{tpu_custom_call.1} parent=43 // pred_region
          %339 = dma.done %s332, 32
        $region52: #{tpu_custom_call.1} parent=43 // pred_fallthru
          _
        %s340 = sand.u32 %s27, 1
        %s341 = scalar_lea.sflag [#allocation7], %s340
        %s342 = sand.u32 %s110, 1
        %s343 = smul.addr %s342, 128
        %s344 = scalar_lea.vmem [#allocation8], %s343
        // Predicated region
        $region53: #{tpu_custom_call.1} parent=43 // pred_check
          %p345 = pneg %p123
        $region54: #{tpu_custom_call.1} parent=43 // pred_check_branch
          %347 = sbr.rel (%p345) target = $region56
        $region55: #{tpu_custom_call.1} parent=43 // pred_region
          %348 = dma.done %s341, 2048
        $region56: #{tpu_custom_call.1} parent=43 // pred_fallthru
          _
        // Predicated region
        $region57: #{tpu_custom_call.1} parent=43 // pred_check
          %p349 = pneg %p165
        $region58: #{tpu_custom_call.1} parent=43 // pred_check_branch
          %351 = sbr.rel (%p349) target = $region60
        $region59: #{tpu_custom_call.1} parent=43 // pred_region
          %352 = dma.done [#allocation10], 1024
        $region60: #{tpu_custom_call.1} parent=43 // pred_fallthru
          _
        %s353 = sand.u32 %s56, 1
        %s354 = scalar_lea.sflag [#allocation4], %s353
        %s355 = sand.u32 %s56, 1
        %s356 = smul.addr %s355, 8
        %s357 = scalar_lea.vmem [#allocation3], %s356
        %p358 = pneg %p69
        %p359 = pneg %p66
        %s360 = sand.u32 %s27, 1
        %s361 = scalar_lea.sflag [#allocation7], %s360
        %s362 = sand.u32 %s84, 1
        %s363 = smul.addr %s362, 2
        %s364 = scalar_lea.vmem [#allocation6], %s363
        %p365 = pneg %p97
        %p366 = pneg %p94
        %s367 = sand.u32 %s27, 1
        %s368 = scalar_lea.sflag [#allocation7], %s367
        %s369 = sand.u32 %s110, 1
        %s370 = smul.addr %s369, 128
        %s371 = scalar_lea.vmem [#allocation8], %s370
        %p372 = pneg %p123
        %p373 = pneg %p120
        %p374 = pneg %p144
        %p375 = pneg %p141
        %p376 = pneg %p165
        %p377 = pneg %p162
        %p378 = pneg %p186
        %p379 = pneg %p183
        %p380 = pneg %p214
        %p381 = pneg %p211
        %s382 = sand.u32 %s201, 1
        %s383 = scalar_lea.sflag [#allocation5], %s382
        %s384 = sand.u32 %s201, 1
        %s385 = smul.addr %s384, 8
        %s386 = scalar_lea.vmem [#allocation11], %s385
        %s387 = smul.u32 2, %s34
        %s388 = smul.u32 2, %s34
        %s389 = smul.u32 32, %s34
        %s390 = sadd.s32 %s33, %s32
        %p392 = scmp.eq.s32.totalorder %s34, 0
        // Predicated region
        $region61: #{tpu_custom_call.1} parent=43 // pred_check
          %p393 = pneg %p392
        $region62: #{tpu_custom_call.1} parent=43 // pred_check_branch
          %395 = sbr.rel (%p393) target = $region64
        $region63: #{tpu_custom_call.1} parent=43 // pred_region
          %396 = vst [vmem:[#allocation2] sm:$0xff] 0.0
        $region64: #{tpu_custom_call.1} parent=43 // pred_fallthru
          _
        %v397 = vld [vmem:[%s326] sm:$0xff]
        %v398 = vunpack.c.l.bf16 %v397
        %v399 = vunpack.c.h.bf16 %v397
        %v400 = vld [vmem:[%s335] sm:$0x3]
        %v402 = vlaneseq
        %v403 = vshrl.u32 %v402, 7
        %v404 = vsub.s32 0, %v403
        %v405 = vrot.slane %v400, %v404
        %v406 = vlaneseq
        %v407 = vshrl.u32 %v406, 7
        %v408 = vsub.s32 1, %v407
        %v409 = vrot.slane %v400, %v408
        %v412 = vmul.f32 %v398, %v405
        %v413 = vmul.f32 %v399, %v409
        %v414 = vpack.c.bf16 %v412, %v412
        %v415 = vpack.c.bf16 %v413, %v413
        %v416 = vld [vmem:[#allocation2] sm:$0xff]
        %v417 = vld [vmem:[%s344] sm:$0xf]
        %v418 = vld [vmem:[%s344 + $0x4] sm:$0xf]
        %v419 = vld [vmem:[%s344 + $0x8] sm:$0xf]
        %v420 = vld [vmem:[%s344 + $0xc] sm:$0xf]
        %v421 = vld [vmem:[%s344 + $0x10] sm:$0xf]
        %v422 = vld [vmem:[%s344 + $0x14] sm:$0xf]
        %v423 = vld [vmem:[%s344 + $0x18] sm:$0xf]
        %v424 = vld [vmem:[%s344 + $0x1c] sm:$0xf]
        %v425 = vld [vmem:[%s344 + $0x20] sm:$0xf]
        %v426 = vld [vmem:[%s344 + $0x24] sm:$0xf]
        %v427 = vld [vmem:[%s344 + $0x28] sm:$0xf]
        %v428 = vld [vmem:[%s344 + $0x2c] sm:$0xf]
        %v429 = vld [vmem:[%s344 + $0x30] sm:$0xf]
        %v430 = vld [vmem:[%s344 + $0x34] sm:$0xf]
        %v431 = vld [vmem:[%s344 + $0x38] sm:$0xf]
        %v432 = vld [vmem:[%s344 + $0x3c] sm:$0xf]
        %v433 = vld [vmem:[%s344 + $0x40] sm:$0xf]
        %v434 = vld [vmem:[%s344 + $0x44] sm:$0xf]
        %v435 = vld [vmem:[%s344 + $0x48] sm:$0xf]
        %v436 = vld [vmem:[%s344 + $0x4c] sm:$0xf]
        %v437 = vld [vmem:[%s344 + $0x50] sm:$0xf]
        %v438 = vld [vmem:[%s344 + $0x54] sm:$0xf]
        %v439 = vld [vmem:[%s344 + $0x58] sm:$0xf]
        %v440 = vld [vmem:[%s344 + $0x5c] sm:$0xf]
        %v441 = vld [vmem:[%s344 + $0x60] sm:$0xf]
        %v442 = vld [vmem:[%s344 + $0x64] sm:$0xf]
        %v443 = vld [vmem:[%s344 + $0x68] sm:$0xf]
        %v444 = vld [vmem:[%s344 + $0x6c] sm:$0xf]
        %v445 = vld [vmem:[%s344 + $0x70] sm:$0xf]
        %v446 = vld [vmem:[%s344 + $0x74] sm:$0xf]
        %v447 = vld [vmem:[%s344 + $0x78] sm:$0xf]
        %v448 = vld [vmem:[%s344 + $0x7c] sm:$0xf]
        %v481 = vunpack.c.l.b16 %v417
        %v482 = vunpack.c.l.b16 %v418
        %v483 = vunpack.c.l.b16 %v419
        %v484 = vunpack.c.l.b16 %v420
        %v485 = vunpack.c.l.b16 %v421
        %v486 = vunpack.c.l.b16 %v422
        %v487 = vunpack.c.l.b16 %v423
        %v488 = vunpack.c.l.b16 %v424
        %v489 = vunpack.c.l.b16 %v425
        %v490 = vunpack.c.l.b16 %v426
        %v491 = vunpack.c.l.b16 %v427
        %v492 = vunpack.c.l.b16 %v428
        %v493 = vunpack.c.l.b16 %v429
        %v494 = vunpack.c.l.b16 %v430
        %v495 = vunpack.c.l.b16 %v431
        %v496 = vunpack.c.l.b16 %v432
        %v497 = vunpack.c.l.b16 %v433
        %v498 = vunpack.c.l.b16 %v434
        %v499 = vunpack.c.l.b16 %v435
        %v500 = vunpack.c.l.b16 %v436
        %v501 = vunpack.c.l.b16 %v437
        %v502 = vunpack.c.l.b16 %v438
        %v503 = vunpack.c.l.b16 %v439
        %v504 = vunpack.c.l.b16 %v440
        %v505 = vunpack.c.l.b16 %v441
        %v506 = vunpack.c.l.b16 %v442
        %v507 = vunpack.c.l.b16 %v443
        %v508 = vunpack.c.l.b16 %v444
        %v509 = vunpack.c.l.b16 %v445
        %v510 = vunpack.c.l.b16 %v446
        %v511 = vunpack.c.l.b16 %v447
        %v512 = vunpack.c.l.b16 %v448
        %v513 = vpack.c.b16 %v482, %v481
        %v514 = vpack.c.b16 %v484, %v483
        %v515 = vpack.c.b16 %v486, %v485
        %v516 = vpack.c.b16 %v488, %v487
        %v517 = vpack.c.b16 %v490, %v489
        %v518 = vpack.c.b16 %v492, %v491
        %v519 = vpack.c.b16 %v494, %v493
        %v520 = vpack.c.b16 %v496, %v495
        %v521 = vpack.c.b16 %v498, %v497
        %v522 = vpack.c.b16 %v500, %v499
        %v523 = vpack.c.b16 %v502, %v501
        %v524 = vpack.c.b16 %v504, %v503
        %v525 = vpack.c.b16 %v506, %v505
        %v526 = vpack.c.b16 %v508, %v507
        %v527 = vpack.c.b16 %v510, %v509
        %v528 = vpack.c.b16 %v512, %v511
        %545 = vmatprep.subr.bf16.mxu0 0
        %546 = vmatpush1.bf16.msra.mxu0 %v520
        %547 = vmatprep.subr.bf16.mxu0 0
        %548 = vmatpush1.bf16.msra.mxu0 %v519
        %549 = vmatprep.subr.bf16.mxu0 0
        %550 = vmatpush1.bf16.msra.mxu0 %v518
        %551 = vmatprep.subr.bf16.mxu0 0
        %552 = vmatpush1.bf16.msra.mxu0 %v517
        %553 = vmatprep.subr.bf16.mxu0 0
        %554 = vmatpush1.bf16.msra.mxu0 %v516
        %555 = vmatprep.subr.bf16.mxu0 0
        %556 = vmatpush1.bf16.msra.mxu0 %v515
        %557 = vmatprep.subr.bf16.mxu0 0
        %558 = vmatpush1.bf16.msra.mxu0 %v514
        %559 = vmatprep.subr.bf16.mxu0 0
        %560 = vmatpush1.bf16.msra.mxu0 %v513
        %561 = vmatprep.subr.bf16.mxu0 0
        %562 = vmatpush2.bf16.msra.mxu0 %v528
        %563 = vmatprep.subr.bf16.mxu0 0
        %564 = vmatpush2.bf16.msra.mxu0 %v527
        %565 = vmatprep.subr.bf16.mxu0 0
        %566 = vmatpush2.bf16.msra.mxu0 %v526
        %567 = vmatprep.subr.bf16.mxu0 0
        %568 = vmatpush2.bf16.msra.mxu0 %v525
        %569 = vmatprep.subr.bf16.mxu0 0
        %570 = vmatpush2.bf16.msra.mxu0 %v524
        %571 = vmatprep.subr.bf16.mxu0 0
        %572 = vmatpush2.bf16.msra.mxu0 %v523
        %573 = vmatprep.subr.bf16.mxu0 0
        %574 = vmatpush2.bf16.msra.mxu0 %v522
        %575 = vmatprep.subr.bf16.mxu0 0
        %576 = vmatpush2.bf16.msra.mxu0 %v521
        %577 = vmatprep.mubr.bf16.mxu0 %v415
        %578 = vmatmul.mubr.bf16.gmra.mxu0 %v414
        %v579 = vpop.f32.mrf.mxu0
        %v580 = vadd.f32 0.0, %v579
        %v581 = vpop.f32.mrf.mxu0
        %v582 = vpop.f32.mrf.mxu0
        %v583 = vpop.f32.mrf.mxu0
        %584 = vdwg.mxu0
        %v585 = vadd.f32 %v416, %v580
        %586 = vst [vmem:[#allocation2] sm:$0xff] %v585
        %p587 = scmp.eq.s32.totalorder %s34, 1
        // Predicated region
        $region65: #{tpu_custom_call.1} parent=43 // pred_check
          %p588 = pneg %p587
        $region66: #{tpu_custom_call.1} parent=43 // pred_check_branch
          %590 = sbr.rel (%p588) target = $region68
        $region67: #{tpu_custom_call.1} parent=43 // pred_region
          %v591 = vld [vmem:[#allocation2] sm:$0xff]
          %v592 = vld [vmem:[%s3] sm:$0x1]
          %v594 = vlaneseq
          %v595 = vshrl.u32 %v594, 7
          %v596 = vsub.s32 0, %v595
          %v597 = vrot.slane %v592, %v596
          %v599 = vadd.f32 %v591, %v597
          %v600 = vmax.f32 %v599, 0.0
          %v601 = vpack.c.bf16 %v600, %v600
          %v602 = vld [vmem:[#allocation9] sm:$0xf]
          %v603 = vld [vmem:[#allocation9 + $0x4] sm:$0xf]
          %v604 = vld [vmem:[#allocation9 + $0x8] sm:$0xf]
          %v605 = vld [vmem:[#allocation9 + $0xc] sm:$0xf]
          %v606 = vld [vmem:[#allocation9 + $0x10] sm:$0xf]
          %v607 = vld [vmem:[#allocation9 + $0x14] sm:$0xf]
          %v608 = vld [vmem:[#allocation9 + $0x18] sm:$0xf]
          %v609 = vld [vmem:[#allocation9 + $0x1c] sm:$0xf]
          %v610 = vld [vmem:[#allocation9 + $0x20] sm:$0xf]
          %v611 = vld [vmem:[#allocation9 + $0x24] sm:$0xf]
          %v612 = vld [vmem:[#allocation9 + $0x28] sm:$0xf]
          %v613 = vld [vmem:[#allocation9 + $0x2c] sm:$0xf]
          %v614 = vld [vmem:[#allocation9 + $0x30] sm:$0xf]
          %v615 = vld [vmem:[#allocation9 + $0x34] sm:$0xf]
          %v616 = vld [vmem:[#allocation9 + $0x38] sm:$0xf]
          %v617 = vld [vmem:[#allocation9 + $0x3c] sm:$0xf]
          %v618 = vld [vmem:[%s5] sm:$0x1]
          %v620 = vlaneseq
          %v621 = vshrl.u32 %v620, 7
          %v622 = vsub.s32 0, %v621
          %v623 = vrot.slane %v618, %v622
          %v641 = vunpack.c.l.b16 %v602
          %v642 = vunpack.c.l.b16 %v603
          %v643 = vunpack.c.l.b16 %v604
          %v644 = vunpack.c.l.b16 %v605
          %v645 = vunpack.c.l.b16 %v606
          %v646 = vunpack.c.l.b16 %v607
          %v647 = vunpack.c.l.b16 %v608
          %v648 = vunpack.c.l.b16 %v609
          %v649 = vunpack.c.l.b16 %v610
          %v650 = vunpack.c.l.b16 %v611
          %v651 = vunpack.c.l.b16 %v612
          %v652 = vunpack.c.l.b16 %v613
          %v653 = vunpack.c.l.b16 %v614
          %v654 = vunpack.c.l.b16 %v615
          %v655 = vunpack.c.l.b16 %v616
          %v656 = vunpack.c.l.b16 %v617
          %v657 = vpack.c.b16 %v642, %v641
          %v658 = vpack.c.b16 %v644, %v643
          %v659 = vpack.c.b16 %v646, %v645
          %v660 = vpack.c.b16 %v648, %v647
          %v661 = vpack.c.b16 %v650, %v649
          %v662 = vpack.c.b16 %v652, %v651
          %v663 = vpack.c.b16 %v654, %v653
          %v664 = vpack.c.b16 %v656, %v655
          %673 = vmatprep.subr.bf16.mxu0 0
          %674 = vmatpush1.bf16.msra.mxu0 %v664
          %675 = vmatprep.subr.bf16.mxu0 0
          %676 = vmatpush1.bf16.msra.mxu0 %v663
          %677 = vmatprep.subr.bf16.mxu0 0
          %678 = vmatpush1.bf16.msra.mxu0 %v662
          %679 = vmatprep.subr.bf16.mxu0 0
          %680 = vmatpush1.bf16.msra.mxu0 %v661
          %681 = vmatprep.subr.bf16.mxu0 0
          %682 = vmatpush1.bf16.msra.mxu0 %v660
          %683 = vmatprep.subr.bf16.mxu0 0
          %684 = vmatpush1.bf16.msra.mxu0 %v659
          %685 = vmatprep.subr.bf16.mxu0 0
          %686 = vmatpush1.bf16.msra.mxu0 %v658
          %687 = vmatprep.subr.bf16.mxu0 0
          %688 = vmatpush1.bf16.msra.mxu0 %v657
          %689 = vmatprep.subr.bf16.mxu0 0
          %690 = vmatpush2.bf16.msra.mxu0 0
          %691 = vmatprep.subr.bf16.mxu0 0
          %692 = vmatpush2.bf16.msra.mxu0 0
          %693 = vmatprep.subr.bf16.mxu0 0
          %694 = vmatpush2.bf16.msra.mxu0 0
          %695 = vmatprep.subr.bf16.mxu0 0
          %696 = vmatpush2.bf16.msra.mxu0 0
          %697 = vmatprep.subr.bf16.mxu0 0
          %698 = vmatpush2.bf16.msra.mxu0 0
          %699 = vmatprep.subr.bf16.mxu0 0
          %700 = vmatpush2.bf16.msra.mxu0 0
          %701 = vmatprep.subr.bf16.mxu0 0
          %702 = vmatpush2.bf16.msra.mxu0 0
          %703 = vmatprep.subr.bf16.mxu0 0
          %704 = vmatpush2.bf16.msra.mxu0 0
          %705 = vmatprep.mubr.bf16.mxu0 0
          %706 = vmatmul.mubr.bf16.gmra.mxu0 %v601
          %v707 = vpop.f32.mrf.mxu0
          %v708 = vadd.f32 %v623, %v707
          %v709 = vpop.f32.mrf.mxu0
          %v710 = vpop.f32.mrf.mxu0
          %v711 = vpop.f32.mrf.mxu0
          %712 = vdwg.mxu0
          %v713 = vmax.f32 %v708, 0.0
          %714 = vst [vmem:[%s386] sm:$0xff] %v713
        $region68: #{tpu_custom_call.1} parent=43 // pred_fallthru
          _
        %s715 = sand.u32 %s201, 1
        %s716 = scalar_lea.sflag [#allocation5], %s715
        %s717 = sand.u32 %s201, 1
        %s718 = smul.addr %s717, 8
        %s719 = scalar_lea.vmem [#allocation11], %s718
        // Predicated region
        $region69: #{tpu_custom_call.1} parent=43 // pred_check
          %p720 = pneg %p211
        $region70: #{tpu_custom_call.1} parent=43 // pred_check_branch
          %722 = sbr.rel (%p720) target = $region72
        $region71: #{tpu_custom_call.1} parent=43 // pred_region
          %s723 = sadd.s32 %s33, %s32
          %s725 = ssub.s32 128, 128
          %726 = vsyncadd %s716, %s725
          %s727 = smul.addr %s723, 128
          %s728 = scalar_lea.hbm %s6, %s727
          %s730 = sshll.u32 %s719, 4
          %s731 = int_to_ptr.vmem [resolvable:$true] %s730
          %733 = dma.vmem_to_hbm [thread:$0]  %s731, 128, %s728, %s716
        $region72: #{tpu_custom_call.1} parent=43 // pred_fallthru
          _
      $region44: #{tpu_custom_call.1} parent=5 // pred_fallthru
        _
      %p734 = scmp.le.s32.totalorder 2, %s22
      // Predicated region
      $region73: #{tpu_custom_call.1} parent=5 // pred_check
        %p735 = pneg %p734
      $region74: #{tpu_custom_call.1} parent=5 // pred_check_branch
        %737 = sbr.rel (%p735) target = $region76
      $region75: #{tpu_custom_call.1} parent=5 // pred_region
        %s738 = ssub.s32 %s22, 2
        // Predicated region
        $region77: #{tpu_custom_call.1} parent=75 // pred_check
          %p739 = pneg %p217
        $region78: #{tpu_custom_call.1} parent=75 // pred_check_branch
          %741 = sbr.rel (%p739) target = $region80
        $region79: #{tpu_custom_call.1} parent=75 // pred_region
          %s742 = sand.u32 %s202, 1
          %s743 = scalar_lea.sflag [#allocation5], %s742
          %s744 = sand.u32 %s202, 1
          %s745 = smul.addr %s744, 8
          %s746 = scalar_lea.vmem [#allocation11], %s745
          %747 = dma.done %s743, 128
        $region80: #{tpu_custom_call.1} parent=75 // pred_fallthru
          _
      $region76: #{tpu_custom_call.1} parent=5 // pred_fallthru
        _
    $region6: #{tpu_custom_call.1} parent=1 // loop_footer
      %s26 = sadd.s32 1, %s22
    $region7: #{tpu_custom_call.1} parent=1 // loop_footer_branch
      %21 = sbr.rel target = $region3
    $region8: #{tpu_custom_call.1} parent=1 // loop_exit
      _
    %748 = vsyncpa [#allocation4], 1
    %s749 = scalar_lea.sflag [#allocation4], 1
    %750 = vsyncpa %s749, 1
    %751 = vsyncpa [#allocation7], 1
    %s752 = scalar_lea.sflag [#allocation7], 1
    %753 = vsyncpa %s752, 1
    %754 = vsyncpa [#allocation10], 1
    %755 = vsyncpa [#allocation5], 1
    %s756 = scalar_lea.sflag [#allocation5], 1
    %757 = vsyncpa %s756, 1

</llo_original>
